<compile_context>
chip_gen: v5e
topology: v5e:2x2
jax: 0.10.0
libtpu: 0.0.40
codegen_flags: <defaults>
</compile_context>

<pallas_src>
import numpy as np
import jax
import jax.numpy as jnp
from jax import lax
from jax.experimental import pallas as pl
from jax.experimental.pallas import tpu as pltpu


# ----------------------------------------------------------------------------
# Kernel
# ----------------------------------------------------------------------------
def _cbam_kernel(x_ref, w1_ref, w2_ref, k_ref, o_ref):
    # x_ref:  (Bblk, C, HW)   VMEM  flattened spatial (lane-dense), storage dtype
    # w1_ref: (C, mid)        VMEM  fc1 weight, pre-transposed, f32
    # w2_ref: (mid, C)        VMEM  fc2 weight, pre-transposed, f32
    # k_ref:  (2*HW, HW)      VMEM  dense 7x7-conv operator (padding folded), bf16
    # o_ref:  (Bblk, C, HW)   VMEM  storage dtype
    x = x_ref[...].astype(jnp.float32)              # (Bblk, C, HW)
    bblk, c, hw = x.shape

    # ---------------- channel attention (tiny fused MLP) --------------------
    avg = jnp.sum(x, axis=2) * (1.0 / hw)           # (Bblk, C)  lane reduce
    mxv = jnp.max(x, axis=2)                        # (Bblk, C)

    w1 = w1_ref[...]
    h = (jnp.maximum(jnp.dot(avg, w1, preferred_element_type=jnp.float32), 0.0)
         + jnp.maximum(jnp.dot(mxv, w1, preferred_element_type=jnp.float32), 0.0))
    att = jax.nn.sigmoid(
        jnp.dot(h, w2_ref[...], preferred_element_type=jnp.float32)
    )                                               # (Bblk, C)

    ca = x * att[:, :, None]                        # (Bblk, C, HW)

    # ---------------- spatial attention (one lane-dense bf16 matmul) --------
    avg_c = jnp.sum(ca, axis=1) * (1.0 / c)         # (Bblk, HW)
    max_c = jnp.max(ca, axis=1)                     # (Bblk, HW)
    planes = jnp.concatenate([avg_c, max_c], axis=1)            # (Bblk, 2*HW)

    conv = jnp.dot(planes.astype(k_ref.dtype), k_ref[...],
                   preferred_element_type=jnp.float32)           # (Bblk, HW)
    sa = jax.nn.sigmoid(conv)

    o_ref[...] = (ca * sa[:, None, :]).astype(o_ref.dtype)


# ----------------------------------------------------------------------------
# Wrapper helpers
# ----------------------------------------------------------------------------
def _build_spatial_operator(w_spatial, H, W, dtype=jnp.bfloat16):
    """Dense (2*HW, HW) operator == Conv2d(2, 1, 7, padding=3, bias=False).

    K[c*HW + hi*W + wi, ho*W + wo] = w[c, hi-ho+3, wi-wo+3] if both offsets are
    in [0, 7), else 0 (zero padding folded in).  Matches PyTorch
    cross-correlation.  Built in f32, stored in `dtype` (bf16 by default).
    """
    wsp = w_spatial.reshape(2, 7, 7).astype(jnp.float32)
    di = jnp.arange(H)[:, None] - jnp.arange(H)[None, :] + 3   # (H_in, H_out)
    dj = jnp.arange(W)[:, None] - jnp.arange(W)[None, :] + 3   # (W_in, W_out)
    vh = (di >= 0) & (di < 7)
    vw = (dj >= 0) & (dj < 7)
    dic = jnp.clip(di, 0, 6)
    djc = jnp.clip(dj, 0, 6)
    K = wsp[:, dic[:, None, :, None], djc[None, :, None, :]]   # (2,H,W,H,W)
    mask = (vh[:, None, :, None] & vw[None, :, None, :]).astype(jnp.float32)
    K = K * mask
    return K.reshape(2 * H * W, H * W).astype(dtype)


def _num_tensorcores():
    """2 for v7x-class (2 TC/chip), else 1.  Never raises."""
    try:
        kind = jax.devices()[0].device_kind.lower()
        if "v7" in kind:
            return 2
    except Exception:
        pass
    return 1


def _vmem_capacity_bytes():
    """Physical VMEM per TensorCore; conservative fallback if unknown."""
    try:
        info = pltpu.get_tpu_info()
        cap = getattr(info, "vmem_capacity_bytes", None)
        if cap:
            return int(cap)
    except Exception:
        pass
    return 64 * 1024 * 1024   # v7x-sized (smallest of the three generations)


def _per_image_vmem_bytes(C, HW, itemsize):
    img = C * HW
    storage = img * itemsize
    f32 = img * 4
    # 2x double-buffered input block + 2x output block (storage dtype)
    # + ~4x f32 working copies (x cast, ca, product, fusion slack)
    # + per-image row temporaries (planes / conv / sa).
    return 4 * storage + 4 * f32 + 8 * HW * 4


def _constant_vmem_bytes(C, mid, HW):
    k_bytes = 2 * HW * HW * 2            # bf16 dense conv operator
    w_bytes = 2 * C * mid * 4            # fc1 + fc2 (f32)
    return 2 * (k_bytes + w_bytes)       # assume double-buffered by pipeliner


def _divisors(n):
    return [d for d in range(1, n + 1) if n % d == 0]


def _pick_block_batch(B, C, HW, itemsize, num_tc, vmem_budget,
                      target_bytes=4 * 1024 * 1024):
    """Pick the batch-block size (a divisor of B, so no tail is dropped)."""
    img_bytes = C * HW * itemsize
    per_img_vmem = _per_image_vmem_bytes(C, HW, itemsize)
    avail = max(per_img_vmem, vmem_budget - _constant_vmem_bytes(C, 8, HW))
    cap_vmem = max(1, avail // per_img_vmem)
    cap_bytes = max(1, target_bytes // max(1, img_bytes))
    cap = int(max(1, min(B, cap_vmem, cap_bytes)))

    divs = _divisors(B)
    cands = [d for d in divs if d <= cap] or [1]
    best = max(cands)
    # Prefer a multiple-of-8 block (fills MXU sublane rows) if it is not much
    # smaller than the largest admissible divisor.
    mult8 = [d for d in cands if d % 8 == 0]
    if mult8 and max(mult8) * 4 >= best * 3:
        best = max(mult8)

    # Generation-aware split: only worth it on 2-TensorCore chips, and only if
    # each piece still moves a meaningful amount of data (>= 1 MiB).
    if num_tc >= 2 and B // best < num_tc:
        alts = [d for d in cands
                if B // d >= num_tc and d * img_bytes >= (1 << 20)]
        if alts:
            best = max(alts)
    return best


# ----------------------------------------------------------------------------
# Public entry point
# ----------------------------------------------------------------------------
def cbam_pallas(x, w1, w2, w_spatial):
    """x: (B,C,H,W); w1: (mid,C) fc1; w2: (C,mid) fc2; w_spatial: (2,7,7).

    Storage dtype follows x (f32 or bf16); compute is f32 inside the kernel,
    spatial-conv matmul operands are bf16.
    """
    B, C, H, W = x.shape
    mid = w1.shape[0]
    HW = H * W
    itemsize = jnp.dtype(x.dtype).itemsize

    x_flat = x.reshape(B, C, HW)                       # lane-dense layout
    w1t = jnp.transpose(w1).astype(jnp.float32)        # (C, mid)
    w2t = jnp.transpose(w2).astype(jnp.float32)        # (mid, C)
    K = _build_spatial_operator(w_spatial, H, W, dtype=jnp.bfloat16)

    num_tc = _num_tensorcores()
    vmem_cap = _vmem_capacity_bytes()
    vmem_budget = min(int(vmem_cap * 0.75),
                      48 * 1024 * 1024 if vmem_cap <= 64 * 1024 * 1024
                      else 100 * 1024 * 1024)

    bblk = _pick_block_batch(B, C, HW, itemsize, num_tc, vmem_budget)
    grid = (B // bblk,)

    # Explicit VMEM limit with headroom (avoids both OOM and silent spilling).
    need = bblk * _per_image_vmem_bytes(C, HW, itemsize) \
        + _constant_vmem_bytes(C, mid, HW) + (1 << 20)
    vmem_limit = int(min(max(32 * 1024 * 1024, need * 3 // 2),
                         int(vmem_cap * 0.9)))

    out_flat = pl.pallas_call(
        _cbam_kernel,
        out_shape=jax.ShapeDtypeStruct((B, C, HW), x.dtype),
        grid_spec=pltpu.PrefetchScalarGridSpec(
            num_scalar_prefetch=0,
            grid=grid,
            in_specs=[
                pl.BlockSpec((bblk, C, HW), lambda b: (b, 0, 0)),
                pl.BlockSpec((C, mid), lambda b: (0, 0)),
                pl.BlockSpec((mid, C), lambda b: (0, 0)),
                pl.BlockSpec((2 * HW, HW), lambda b: (0, 0)),
            ],
            out_specs=pl.BlockSpec((bblk, C, HW), lambda b: (b, 0, 0)),
        ),
        compiler_params=pltpu.CompilerParams(
            dimension_semantics=("parallel",),
            vmem_limit_bytes=vmem_limit,
        ),
    )(x_flat, w1t, w2t, K)

    return out_flat.reshape(B, C, H, W)


# ----------------------------------------------------------------------------
# Pure-JAX reference (matches the PyTorch module semantics, f32)
# ----------------------------------------------------------------------------
def cbam_reference(x, w1, w2, w_spatial):
    wsp = w_spatial.reshape(1, 2, 7, 7)
    avg = jnp.mean(x, axis=(2, 3), keepdims=True)          # (B, C, 1, 1)
    mxv = jnp.max(x, axis=(2, 3), keepdims=True)

    def mlp(v):
        h = jnp.einsum('mc,bcij->bmij', w1, v)
        h = jax.nn.relu(h)
        return jnp.einsum('cm,bmij->bcij', w2, h)

    att = jax.nn.sigmoid(mlp(avg) + mlp(mxv))
    ca = att * x
    avg_c = jnp.mean(ca, axis=1, keepdims=True)
    max_c = jnp.max(ca, axis=1, keepdims=True)
    inp = jnp.concatenate([avg_c, max_c], axis=1)           # (B, 2, H, W)
    conv = lax.conv_general_dilated(
        inp, wsp, window_strides=(1, 1), padding=[(3, 3), (3, 3)],
        dimension_numbers=('NCHW', 'OIHW', 'NCHW'))
    sa = jax.nn.sigmoid(conv)
    return sa * ca


if __name__ == "__main__":
    # CBAM(channels=32, reduction=16) -> mid = 2
    B, C, H, W = 2, 32, 16, 16
    reduction = 16
    mid = C // reduction

    key = jax.random.PRNGKey(0)
    kx, k1, k2, k3 = jax.random.split(key, 4)

    x = jax.random.normal(kx, (B, C, H, W), dtype=jnp.float32)
    # Deterministic synthetic weights (kaiming-ish scaling), no checkpoint load.
    w1 = jax.random.normal(k1, (mid, C), dtype=jnp.float32) * (1.0 / np.sqrt(C))
    w2 = jax.random.normal(k2, (C, mid), dtype=jnp.float32) * (1.0 / np.sqrt(mid))
    w_spatial = jax.random.normal(k3, (2, 7, 7), dtype=jnp.float32) * (1.0 / np.sqrt(2 * 49))

    out = jax.block_until_ready(cbam_pallas(x, w1, w2, w_spatial))
    ref = jax.block_until_ready(cbam_reference(x, w1, w2, w_spatial))
    # Spatial-conv matmul operands are bf16 (f32 accumulation) -> tolerance is
    # loosened vs. the all-f32 reference.
    np.testing.assert_allclose(np.asarray(out), np.asarray(ref), rtol=3e-2, atol=3e-2)

    print("KERNEL_OK")
</pallas_src>

<mosaic_0001>
module attributes {stable_mosaic.version = 11 : i64} {
  func.func @_cbam_kernel(%arg0: i32, %arg1: memref<2x32x256xf32, #tpu.memory_space<vmem>>, %arg2: memref<32x2xf32, #tpu.memory_space<vmem>>, %arg3: memref<2x32xf32, #tpu.memory_space<vmem>>, %arg4: memref<512x256xbf16, #tpu.memory_space<vmem>>, %arg5: memref<2x32x256xf32, #tpu.memory_space<vmem>>) attributes {dimension_semantics = [#tpu.dimension_semantics<parallel>], iteration_bounds = array<i64: 1>, scalar_prefetch = 0 : i64, scratch_operands = 0 : i64, tpu.core_type = #tpu.core_type<tc>, window_params = [{transform_indices = @transform_0, window_bounds = array<i64: 2, 32, 256>}, {pipeline_mode = #tpu.pipeline_mode<synchronous>, transform_indices = @transform_1, window_bounds = array<i64: 32, 2>}, {pipeline_mode = #tpu.pipeline_mode<synchronous>, transform_indices = @transform_2, window_bounds = array<i64: 2, 32>}, {pipeline_mode = #tpu.pipeline_mode<synchronous>, transform_indices = @transform_3, window_bounds = array<i64: 512, 256>}, {transform_indices = @transform_4, window_bounds = array<i64: 2, 32, 256>}]} {
    %c0 = arith.constant 0 : index
    %c0_0 = arith.constant 0 : index
    %c0_1 = arith.constant 0 : index
    %0 = vector.load %arg1[%c0, %c0_0, %c0_1] : memref<2x32x256xf32, #tpu.memory_space<vmem>>, vector<2x32x256xf32>
    %cst = arith.constant dense<0.000000e+00> : vector<2x32xf32>
    %1 = vector.multi_reduction <add>, %0, %cst [2] : vector<2x32x256xf32> to vector<2x32xf32>
    %cst_2 = arith.constant 3.906250e-03 : f32
    %2 = vector.broadcast %cst_2 : f32 to vector<2x32xf32>
    %3 = arith.mulf %1, %2 : vector<2x32xf32>
    %cst_3 = arith.constant dense<0xFF800000> : vector<2x32xf32>
    %4 = vector.multi_reduction <maximumf>, %0, %cst_3 [2] : vector<2x32x256xf32> to vector<2x32xf32>
    %c0_4 = arith.constant 0 : index
    %c0_5 = arith.constant 0 : index
    %5 = vector.load %arg2[%c0_4, %c0_5] : memref<32x2xf32, #tpu.memory_space<vmem>>, vector<32x2xf32>
    %cst_6 = arith.constant dense<0.000000e+00> : vector<2x2xf32>
    %6 = tpu.matmul %3, %5, %cst_6 {dimension_numbers = #tpu.dot_dimension_numbers<[1], [0], [0], [1], [0, 0, 1, 1], [], []>} : vector<2x32xf32>, vector<32x2xf32>, vector<2x2xf32> -> vector<2x2xf32>
    %cst_7 = arith.constant 0.000000e+00 : f32
    %7 = vector.broadcast %cst_7 : f32 to vector<2x2xf32>
    %8 = arith.maximumf %6, %7 : vector<2x2xf32>
    %cst_8 = arith.constant dense<0.000000e+00> : vector<2x2xf32>
    %9 = tpu.matmul %4, %5, %cst_8 {dimension_numbers = #tpu.dot_dimension_numbers<[1], [0], [0], [1], [0, 0, 1, 1], [], []>} : vector<2x32xf32>, vector<32x2xf32>, vector<2x2xf32> -> vector<2x2xf32>
    %cst_9 = arith.constant 0.000000e+00 : f32
    %10 = vector.broadcast %cst_9 : f32 to vector<2x2xf32>
    %11 = arith.maximumf %9, %10 : vector<2x2xf32>
    %12 = arith.addf %8, %11 : vector<2x2xf32>
    %c0_10 = arith.constant 0 : index
    %c0_11 = arith.constant 0 : index
    %13 = vector.load %arg3[%c0_10, %c0_11] : memref<2x32xf32, #tpu.memory_space<vmem>>, vector<2x32xf32>
    %cst_12 = arith.constant dense<0.000000e+00> : vector<2x32xf32>
    %14 = tpu.matmul %12, %13, %cst_12 {dimension_numbers = #tpu.dot_dimension_numbers<[1], [0], [0], [1], [0, 0, 1, 1], [], []>} : vector<2x2xf32>, vector<2x32xf32>, vector<2x32xf32> -> vector<2x32xf32>
    %15 = arith.negf %14 : vector<2x32xf32>
    %16 = math.exp %15 : vector<2x32xf32>
    %cst_13 = arith.constant 1.000000e+00 : f32
    %17 = vector.broadcast %cst_13 : f32 to vector<2x32xf32>
    %18 = arith.addf %17, %16 : vector<2x32xf32>
    %19 = arith.divf %17, %18 : vector<2x32xf32>
    %20 = vector.shape_cast %19 : vector<2x32xf32> to vector<2x32x1xf32>
    %21 = vector.broadcast %20 : vector<2x32x1xf32> to vector<2x32x256xf32>
    %22 = arith.mulf %0, %21 : vector<2x32x256xf32>
    %cst_14 = arith.constant dense<0.000000e+00> : vector<2x256xf32>
    %23 = vector.multi_reduction <add>, %22, %cst_14 [1] : vector<2x32x256xf32> to vector<2x256xf32>
    %cst_15 = arith.constant 3.125000e-02 : f32
    %24 = vector.broadcast %cst_15 : f32 to vector<2x256xf32>
    %25 = arith.mulf %23, %24 : vector<2x256xf32>
    %cst_16 = arith.constant dense<0xFF800000> : vector<2x256xf32>
    %26 = vector.multi_reduction <maximumf>, %22, %cst_16 [1] : vector<2x32x256xf32> to vector<2x256xf32>
    %27 = tpu.concatenate %25, %26 in 1 : vector<2x256xf32>, vector<2x256xf32> -> vector<2x512xf32>
    %28 = arith.truncf %27 : vector<2x512xf32> to vector<2x512xbf16>
    %c0_17 = arith.constant 0 : index
    %c0_18 = arith.constant 0 : index
    %29 = vector.load %arg4[%c0_17, %c0_18] : memref<512x256xbf16, #tpu.memory_space<vmem>>, vector<512x256xbf16>
    %cst_19 = arith.constant dense<0.000000e+00> : vector<2x256xf32>
    %30 = tpu.matmul %28, %29, %cst_19 {dimension_numbers = #tpu.dot_dimension_numbers<[1], [0], [0], [1], [0, 0, 1, 1], [], []>} : vector<2x512xbf16>, vector<512x256xbf16>, vector<2x256xf32> -> vector<2x256xf32>
    %31 = arith.negf %30 : vector<2x256xf32>
    %32 = math.exp %31 : vector<2x256xf32>
    %cst_20 = arith.constant 1.000000e+00 : f32
    %33 = vector.broadcast %cst_20 : f32 to vector<2x256xf32>
    %34 = arith.addf %33, %32 : vector<2x256xf32>
    %35 = arith.divf %33, %34 : vector<2x256xf32>
    %36 = vector.shape_cast %35 : vector<2x256xf32> to vector<2x1x256xf32>
    %37 = vector.broadcast %36 : vector<2x1x256xf32> to vector<2x32x256xf32>
    %38 = arith.mulf %22, %37 : vector<2x32x256xf32>
    %c0_21 = arith.constant 0 : index
    %c0_22 = arith.constant 0 : index
    %c0_23 = arith.constant 0 : index
    %39 = vector.load %arg5[%c0_21, %c0_22, %c0_23] : memref<2x32x256xf32, #tpu.memory_space<vmem>>, vector<2x32x256xf32>
    tpu.vector_store %arg5[%c0_21, %c0_22, %c0_23], %38 {strides = array<i32>} : memref<2x32x256xf32, #tpu.memory_space<vmem>>, vector<2x32x256xf32>,
    return
  }
  func.func @transform_0(%arg0: i32) -> (i32, i32, i32) {
    %c0_i32 = arith.constant 0 : i32
    %c0_i32_0 = arith.constant 0 : i32
    %c0_i32_1 = arith.constant 0 : i32
    return %arg0, %c0_i32, %c0_i32_0 : i32, i32, i32
  }
  func.func @transform_1(%arg0: i32) -> (i32, i32) {
    %c0_i32 = arith.constant 0 : i32
    %c0_i32_0 = arith.constant 0 : i32
    %c0_i32_1 = arith.constant 0 : i32
    return %c0_i32, %c0_i32_0 : i32, i32
  }
  func.func @transform_2(%arg0: i32) -> (i32, i32) {
    %c0_i32 = arith.constant 0 : i32
    %c0_i32_0 = arith.constant 0 : i32
    %c0_i32_1 = arith.constant 0 : i32
    return %c0_i32, %c0_i32_0 : i32, i32
  }
  func.func @transform_3(%arg0: i32) -> (i32, i32) {
    %c0_i32 = arith.constant 0 : i32
    %c0_i32_0 = arith.constant 0 : i32
    %c0_i32_1 = arith.constant 0 : i32
    return %c0_i32, %c0_i32_0 : i32, i32
  }
  func.func @transform_4(%arg0: i32) -> (i32, i32, i32) {
    %c0_i32 = arith.constant 0 : i32
    %c0_i32_0 = arith.constant 0 : i32
    %c0_i32_1 = arith.constant 0 : i32
    return %arg0, %c0_i32, %c0_i32_0 : i32, i32, i32
  }
}

</mosaic_0001>

<llo_original>
// kernel: tpu_custom_call.1
$region0: #{tpu_custom_call.1}
  #allocation0 [shape = 'u32[]', space=smem, size = 0x4, offset = 0x4, fixed_abs, tag = 'smem constant byte address 0x4 - core index']
  #allocation1 [shape = 'u32[72,128]{1,0:T(1,128)}', space=vmem, size = 0x9000, scoped, tag = 'internal scratch']
  %s0 = inlined_call_operand.hbm [shape: f32[2,32,256], index: 0, kind: input, shape index: {}]
  %s1 = inlined_call_operand.vmem [shape: f32[32,2], index: 1, kind: input, shape index: {}]
  %s2 = inlined_call_operand.vmem [shape: f32[2,32], index: 2, kind: input, shape index: {}]
  %s3 = inlined_call_operand.hbm [shape: bf16[512,256], index: 3, kind: input, shape index: {}]
  %s4 = inlined_call_operand.hbm [shape: f32[2,32,256], index: 4, kind: output, shape index: {}]
  %s5 = sld [smem:[#allocation0]]
  $region34: #{tpu_custom_call.1} parent=0
    _
  %s7 = ssub.s32 1, %s5
  %s8 = scalar_select 0, %s7, %s5
  $region1: #{tpu_custom_call.1} parent=0
    #allocation2 [shape = 'u8[65536]{0}', space=vmem, size = 0x10000, scoped, tag = 'input window, operand 0, single buffered']
    #allocation3 [shape = 's32[1]{0}', space=sflag, size = 0x4, scoped, tag = 'scoped memory for tpu_custom_call.1']
    #allocation4 [shape = 's32[1]{0}', space=sflag, size = 0x4, scoped, tag = 'scoped memory for tpu_custom_call.1']
    #allocation5 [shape = 'u8[262144]{0}', space=vmem, size = 0x40000, scoped, tag = 'input window, operand 3, single buffered']
    #allocation6 [shape = 's32[1]{0}', space=sflag, size = 0x4, scoped, tag = 'scoped memory for tpu_custom_call.1']
    #allocation7 [shape = 'u8[65536]{0}', space=vmem, size = 0x10000, scoped, tag = 'output window, operand 0, single buffered']
    %9 = vsyncpa [#allocation3], 0
    %10 = vsyncpa [#allocation6], 0
    %11 = vsyncpa [#allocation4], 0
    // Predicated region
    $region2: #{tpu_custom_call.1} parent=1 // pred_check
      _
    $region3: #{tpu_custom_call.1} parent=1 // pred_check_branch
      %13 = sbr.rel (0) target = $region5
    $region4: #{tpu_custom_call.1} parent=1 // pred_region
      %15 = vsyncadd [#allocation3], 0
      %s16 = sshll.u32 %s0, 4
      %s17 = int_to_ptr.hbm [resolvable:$true] %s16
      %s18 = sshll.u32 [#allocation2], 4
      %s19 = int_to_ptr.vmem [resolvable:$true] %s18
      %24 = dma.hbm_to_vmem [thread:$0]  %s17, 2048, %s19, [#allocation3], 256, 256, 16
    $region5: #{tpu_custom_call.1} parent=1 // pred_fallthru
      _
    // Predicated region
    $region6: #{tpu_custom_call.1} parent=1 // pred_check
      _
    $region7: #{tpu_custom_call.1} parent=1 // pred_check_branch
      %26 = sbr.rel (0) target = $region9
    $region8: #{tpu_custom_call.1} parent=1 // pred_region
      _
    $region9: #{tpu_custom_call.1} parent=1 // pred_fallthru
      _
    // Predicated region
    $region10: #{tpu_custom_call.1} parent=1 // pred_check
      _
    $region11: #{tpu_custom_call.1} parent=1 // pred_check_branch
      %28 = sbr.rel (0) target = $region13
    $region12: #{tpu_custom_call.1} parent=1 // pred_region
      _
    $region13: #{tpu_custom_call.1} parent=1 // pred_fallthru
      _
    // Predicated region
    $region14: #{tpu_custom_call.1} parent=1 // pred_check
      _
    $region15: #{tpu_custom_call.1} parent=1 // pred_check_branch
      %30 = sbr.rel (0) target = $region17
    $region16: #{tpu_custom_call.1} parent=1 // pred_region
      %32 = vsyncadd [#allocation6], 0
      %s33 = sshll.u32 %s3, 4
      %s34 = int_to_ptr.hbm [resolvable:$true] %s33
      %s35 = sshll.u32 [#allocation5], 4
      %s36 = int_to_ptr.vmem [resolvable:$true] %s35
      %41 = dma.hbm_to_vmem [thread:$0]  %s34, 8192, %s36, [#allocation6], 128, 128, 8
    $region17: #{tpu_custom_call.1} parent=1 // pred_fallthru
      _
    // Predicated region
    $region18: #{tpu_custom_call.1} parent=1 // pred_check
      _
    $region19: #{tpu_custom_call.1} parent=1 // pred_check_branch
      %43 = sbr.rel (0) target = $region21
    $region20: #{tpu_custom_call.1} parent=1 // pred_region
      %45 = dma.done [#allocation3], 2048
    $region21: #{tpu_custom_call.1} parent=1 // pred_fallthru
      _
    // Predicated region
    $region22: #{tpu_custom_call.1} parent=1 // pred_check
      _
    $region23: #{tpu_custom_call.1} parent=1 // pred_check_branch
      %47 = sbr.rel (0) target = $region25
    $region24: #{tpu_custom_call.1} parent=1 // pred_region
      %49 = dma.done [#allocation6], 8192
    $region25: #{tpu_custom_call.1} parent=1 // pred_fallthru
      _
    %v50 = vld [vmem:[#allocation2] sm:$0xff]
    %v51 = vld [vmem:[#allocation2 + $0x8] sm:$0xff]
    %v52 = vld [vmem:[#allocation2 + $0x10] sm:$0xff]
    %v53 = vld [vmem:[#allocation2 + $0x18] sm:$0xff]
    %v54 = vld [vmem:[#allocation2 + $0x20] sm:$0xff]
    %v55 = vld [vmem:[#allocation2 + $0x28] sm:$0xff]
    %v56 = vld [vmem:[#allocation2 + $0x30] sm:$0xff]
    %v57 = vld [vmem:[#allocation2 + $0x38] sm:$0xff]
    %v58 = vld [vmem:[#allocation2 + $0x40] sm:$0xff]
    %v59 = vld [vmem:[#allocation2 + $0x48] sm:$0xff]
    %v60 = vld [vmem:[#allocation2 + $0x50] sm:$0xff]
    %v61 = vld [vmem:[#allocation2 + $0x58] sm:$0xff]
    %v62 = vld [vmem:[#allocation2 + $0x60] sm:$0xff]
    %v63 = vld [vmem:[#allocation2 + $0x68] sm:$0xff]
    %v64 = vld [vmem:[#allocation2 + $0x70] sm:$0xff]
    %v65 = vld [vmem:[#allocation2 + $0x78] sm:$0xff]
    %v66 = vadd.f32 %v50, %v51
    %67 = vadd.xlane.f32.xlu0 %v66
    %v68 = vpop.xlane.xlu0 %67
    %v69 = vadd.f32 %v52, %v53
    %70 = vadd.xlane.f32.xlu0 %v69
    %v71 = vpop.xlane.xlu0 %70
    %v72 = vadd.f32 %v54, %v55
    %73 = vadd.xlane.f32.xlu0 %v72
    %v74 = vpop.xlane.xlu0 %73
    %v75 = vadd.f32 %v56, %v57
    %76 = vadd.xlane.f32.xlu0 %v75
    %v77 = vpop.xlane.xlu0 %76
    %v78 = vadd.f32 %v58, %v59
    %79 = vadd.xlane.f32.xlu0 %v78
    %v80 = vpop.xlane.xlu0 %79
    %v81 = vadd.f32 %v60, %v61
    %82 = vadd.xlane.f32.xlu0 %v81
    %v83 = vpop.xlane.xlu0 %82
    %v84 = vadd.f32 %v62, %v63
    %85 = vadd.xlane.f32.xlu0 %v84
    %v86 = vpop.xlane.xlu0 %85
    %v87 = vadd.f32 %v64, %v65
    %88 = vadd.xlane.f32.xlu0 %v87
    %v89 = vpop.xlane.xlu0 %88
    %v90 = vmul.f32 %v68, 0.00390625
    %v91 = vmul.f32 %v71, 0.00390625
    %v92 = vmul.f32 %v74, 0.00390625
    %v93 = vmul.f32 %v77, 0.00390625
    %v94 = vmul.f32 %v80, 0.00390625
    %v95 = vmul.f32 %v83, 0.00390625
    %v96 = vmul.f32 %v86, 0.00390625
    %v97 = vmul.f32 %v89, 0.00390625
    %v98 = vmax.f32 %v50, %v51
    %99 = vmax.xlane.f32.xlu0 %v98
    %v100 = vpop.xlane.xlu0 %99
    %v101 = vmax.f32 %v52, %v53
    %102 = vmax.xlane.f32.xlu0 %v101
    %v103 = vpop.xlane.xlu0 %102
    %v104 = vmax.f32 %v54, %v55
    %105 = vmax.xlane.f32.xlu0 %v104
    %v106 = vpop.xlane.xlu0 %105
    %v107 = vmax.f32 %v56, %v57
    %108 = vmax.xlane.f32.xlu0 %v107
    %v109 = vpop.xlane.xlu0 %108
    %v110 = vmax.f32 %v58, %v59
    %111 = vmax.xlane.f32.xlu0 %v110
    %v112 = vpop.xlane.xlu0 %111
    %v113 = vmax.f32 %v60, %v61
    %114 = vmax.xlane.f32.xlu0 %v113
    %v115 = vpop.xlane.xlu0 %114
    %v116 = vmax.f32 %v62, %v63
    %117 = vmax.xlane.f32.xlu0 %v116
    %v118 = vpop.xlane.xlu0 %117
    %v119 = vmax.f32 %v64, %v65
    %120 = vmax.xlane.f32.xlu0 %v119
    %v121 = vpop.xlane.xlu0 %120
    %v122 = vld [vmem:[%s1] sm:$0xff]
    %v123 = vld [vmem:[%s1 + $0x8] sm:$0xff]
    %v124 = vld [vmem:[%s1 + $0x10] sm:$0xff]
    %v125 = vld [vmem:[%s1 + $0x18] sm:$0xff]
    %v134 = vlaneseq
    %v135 = vand.u32 %v134, 127
    %v136 = vperm.slane %v90, %v135
    %v137 = vadd.s32 %v135, 4294967288
    %v138 = vperm.slane %v91, %v137
    %vm139 = vcmask 130112
    %v140 = vsel %vm139, %v138, %v136
    %v141 = vadd.s32 %v135, 4294967280
    %v142 = vperm.slane %v92, %v141
    %vm143 = vcmask 195712
    %v144 = vsel %vm143, %v142, %v140
    %v145 = vadd.s32 %v135, 4294967272
    %v146 = vperm.slane %v93, %v145
    %vm147 = vcmask 261312
    %v148 = vsel %vm147, %v146, %v144
    %v149 = vperm.slane %v94, %v135
    %v150 = vperm.slane %v95, %v137
    %v151 = vsel %vm139, %v150, %v149
    %v152 = vperm.slane %v96, %v141
    %v153 = vsel %vm143, %v152, %v151
    %v154 = vperm.slane %v97, %v145
    %v155 = vsel %vm147, %v154, %v153
    %vm156 = vcmask 1041409
    %v157 = vsel %vm156, %v155, %v148
    %vm158 = vcmask 261120
    %v159 = vsel %vm158, %v157, 0
    %161 = vmatpush.msra.mxu0 0.0
    %162 = vmatpush.msra.mxu0 0.0
    %163 = vmatpush.msra.mxu0 0.0
    %164 = vmatpush.msra.mxu0 0.0
    %165 = vmatpush.msra.mxu0 0.0
    %166 = vmatpush.msra.mxu0 0.0
    %167 = vmatpush.msra.mxu0 0.0
    %168 = vmatpush.msra.mxu0 0.0
    %169 = vmatpush.msra.mxu0 0.0
    %170 = vmatpush.msra.mxu0 0.0
    %171 = vmatpush.msra.mxu0 0.0
    %172 = vmatpush.msra.mxu0 0.0
    %173 = vmatpush.msra.mxu0 %v125
    %174 = vmatpush.msra.mxu0 %v124
    %175 = vmatpush.msra.mxu0 %v123
    %176 = vmatpush.msra.mxu0 %v122
    %177 = vmatmul.f32.gmra.mxu0 %v159
    %v178 = vpop.f32.mrf.mxu0
    %v179 = vadd.f32 0.0, %v178
    %180 = vdwg.mxu0
    %v181 = vmax.f32 %v179, 0.0
    %v190 = vperm.slane %v100, %v135
    %v191 = vperm.slane %v103, %v137
    %v192 = vsel %vm139, %v191, %v190
    %v193 = vperm.slane %v106, %v141
    %v194 = vsel %vm143, %v193, %v192
    %v195 = vperm.slane %v109, %v145
    %v196 = vsel %vm147, %v195, %v194
    %v197 = vperm.slane %v112, %v135
    %v198 = vperm.slane %v115, %v137
    %v199 = vsel %vm139, %v198, %v197
    %v200 = vperm.slane %v118, %v141
    %v201 = vsel %vm143, %v200, %v199
    %v202 = vperm.slane %v121, %v145
    %v203 = vsel %vm147, %v202, %v201
    %v204 = vsel %vm156, %v203, %v196
    %v205 = vsel %vm158, %v204, 0
    %207 = vmatpush.msra.mxu0 0.0
    %208 = vmatpush.msra.mxu0 0.0
    %209 = vmatpush.msra.mxu0 0.0
    %210 = vmatpush.msra.mxu0 0.0
    %211 = vmatpush.msra.mxu0 0.0
    %212 = vmatpush.msra.mxu0 0.0
    %213 = vmatpush.msra.mxu0 0.0
    %214 = vmatpush.msra.mxu0 0.0
    %215 = vmatpush.msra.mxu0 0.0
    %216 = vmatpush.msra.mxu0 0.0
    %217 = vmatpush.msra.mxu0 0.0
    %218 = vmatpush.msra.mxu0 0.0
    %219 = vmatpush.msra.mxu0 %v125
    %220 = vmatpush.msra.mxu0 %v124
    %221 = vmatpush.msra.mxu0 %v123
    %222 = vmatpush.msra.mxu0 %v122
    %223 = vmatmul.f32.gmra.mxu0 %v205
    %v224 = vpop.f32.mrf.mxu0
    %v225 = vadd.f32 0.0, %v224
    %226 = vdwg.mxu0
    %v227 = vmax.f32 %v225, 0.0
    %v228 = vadd.f32 %v181, %v227
    %v229 = vld [vmem:[%s2] sm:$0x3]
    %vm230 = vcmask 15360
    %v232 = vsel %vm230, %v228, 0
    %vm234 = vcmask 1041408
    %v236 = vsel %vm234, %v229, 0
    %238 = vmatpush.msra.mxu0 0.0
    %239 = vmatpush.msra.mxu0 0.0
    %240 = vmatpush.msra.mxu0 0.0
    %241 = vmatpush.msra.mxu0 0.0
    %242 = vmatpush.msra.mxu0 0.0
    %243 = vmatpush.msra.mxu0 0.0
    %244 = vmatpush.msra.mxu0 0.0
    %245 = vmatpush.msra.mxu0 0.0
    %246 = vmatpush.msra.mxu0 0.0
    %247 = vmatpush.msra.mxu0 0.0
    %248 = vmatpush.msra.mxu0 0.0
    %249 = vmatpush.msra.mxu0 0.0
    %250 = vmatpush.msra.mxu0 0.0
    %251 = vmatpush.msra.mxu0 0.0
    %252 = vmatpush.msra.mxu0 0.0
    %253 = vmatpush.msra.mxu0 %v236
    %254 = vmatmul.f32.gmra.mxu0 %v232
    %v255 = vpop.f32.mrf.mxu0
    %v256 = vadd.f32 0.0, %v255
    %257 = vdwg.mxu0
    %v258 = vxor.u32 %v256, 2147483648
    %v259 = vmul.f32 %v258, 1.442695
    %v260 = vpow.pop %v259
    %v261 = vadd.f32 %v260, 1.0
    %v262 = vrcp.pop %v261
    %v263 = vmul.f32 %v261, %v262
    %v264 = vsub.f32 1.0, %v263
    %v265 = vmul.f32 %v262, %v264
    %v266 = vadd.f32 %v262, %v265
    %vm267 = vweird.f32 %v261
    %vm268 = vweird.f32 %v262
    %vm269 = vmor %vm267, %vm268
    %v270 = vsel %vm269, %v262, %v266
    %v271 = vand.u32 2147483647, %v261
    %vm272 = vcmp.eq.f32.partialorder %v271, 8.507059e+37
    %v273 = vand.u32 %v261, 2147483648
    %v274 = vor.u32 1.1754944e-38, %v273
    %v275 = vsel %vm272, %v274, %v270
    %v276 = vmul.f32 1.0, %v275
    %v277 = vperm.slane %v276, 0
    %v278 = vlaneseq
    %v279 = vshrl.u32 %v278, 7
    %281 = vset.pattern.permute.xlu0 %v279
    %282 = vperm.xlu0 %281, %v277
    %v283 = vpop.permute.xlu0 %282
    %v284 = vlaneseq
    %v285 = vshrl.u32 %v284, 7
    %v286 = vadd.s32 %v285, 8
    %287 = vset.pattern.permute.xlu0 %v286
    %288 = vperm.xlu0 %287, %v277
    %v289 = vpop.permute.xlu0 %288
    %v290 = vlaneseq
    %v291 = vshrl.u32 %v290, 7
    %v292 = vadd.s32 %v291, 16
    %293 = vset.pattern.permute.xlu0 %v292
    %294 = vperm.xlu0 %293, %v277
    %v295 = vpop.permute.xlu0 %294
    %v296 = vlaneseq
    %v297 = vshrl.u32 %v296, 7
    %v298 = vadd.s32 %v297, 24
    %299 = vset.pattern.permute.xlu0 %v298
    %300 = vperm.xlu0 %299, %v277
    %v301 = vpop.permute.xlu0 %300
    %v302 = vperm.slane %v276, 1
    %v303 = vlaneseq
    %v304 = vshrl.u32 %v303, 7
    %306 = vset.pattern.permute.xlu0 %v304
    %307 = vperm.xlu0 %306, %v302
    %v308 = vpop.permute.xlu0 %307
    %v309 = vlaneseq
    %v310 = vshrl.u32 %v309, 7
    %v311 = vadd.s32 %v310, 8
    %312 = vset.pattern.permute.xlu0 %v311
    %313 = vperm.xlu0 %312, %v302
    %v314 = vpop.permute.xlu0 %313
    %v315 = vlaneseq
    %v316 = vshrl.u32 %v315, 7
    %v317 = vadd.s32 %v316, 16
    %318 = vset.pattern.permute.xlu0 %v317
    %319 = vperm.xlu0 %318, %v302
    %v320 = vpop.permute.xlu0 %319
    %v321 = vlaneseq
    %v322 = vshrl.u32 %v321, 7
    %v323 = vadd.s32 %v322, 24
    %324 = vset.pattern.permute.xlu0 %v323
    %325 = vperm.xlu0 %324, %v302
    %v326 = vpop.permute.xlu0 %325
    %v327 = vmul.f32 %v50, %v283
    %v328 = vmul.f32 %v51, %v283
    %v329 = vmul.f32 %v52, %v289
    %v330 = vmul.f32 %v53, %v289
    %v331 = vmul.f32 %v54, %v295
    %v332 = vmul.f32 %v55, %v295
    %v333 = vmul.f32 %v56, %v301
    %v334 = vmul.f32 %v57, %v301
    %v335 = vmul.f32 %v58, %v308
    %v336 = vmul.f32 %v59, %v308
    %v337 = vmul.f32 %v60, %v314
    %v338 = vmul.f32 %v61, %v314
    %v339 = vmul.f32 %v62, %v320
    %v340 = vmul.f32 %v63, %v320
    %v341 = vmul.f32 %v64, %v326
    %v342 = vmul.f32 %v65, %v326
    %v343 = vadd.f32 %v327, %v329
    %v344 = vadd.f32 %v343, %v331
    %v345 = vadd.f32 %v344, %v333
    %v346 = vrot.slane %v345, 4
    %v347 = vadd.f32 %v345, %v346
    %v348 = vrot.slane %v347, 2
    %v349 = vadd.f32 %v347, %v348
    %v350 = vrot.slane %v349, 1
    %v351 = vadd.f32 %v349, %v350
    %v352 = vadd.f32 %v328, %v330
    %v353 = vadd.f32 %v352, %v332
    %v354 = vadd.f32 %v353, %v334
    %v355 = vrot.slane %v354, 4
    %v356 = vadd.f32 %v354, %v355
    %v357 = vrot.slane %v356, 2
    %v358 = vadd.f32 %v356, %v357
    %v359 = vrot.slane %v358, 1
    %v360 = vadd.f32 %v358, %v359
    %v361 = vadd.f32 %v335, %v337
    %v362 = vadd.f32 %v361, %v339
    %v363 = vadd.f32 %v362, %v341
    %v364 = vrot.slane %v363, 4
    %v365 = vadd.f32 %v363, %v364
    %v366 = vrot.slane %v365, 2
    %v367 = vadd.f32 %v365, %v366
    %v368 = vrot.slane %v367, 1
    %v369 = vadd.f32 %v367, %v368
    %v370 = vadd.f32 %v336, %v338
    %v371 = vadd.f32 %v370, %v340
    %v372 = vadd.f32 %v371, %v342
    %v373 = vrot.slane %v372, 4
    %v374 = vadd.f32 %v372, %v373
    %v375 = vrot.slane %v374, 2
    %v376 = vadd.f32 %v374, %v375
    %v377 = vrot.slane %v376, 1
    %v378 = vadd.f32 %v376, %v377
    %v379 = vmul.f32 %v351, 0.03125
    %v380 = vmul.f32 %v360, 0.03125
    %v381 = vmul.f32 %v369, 0.03125
    %v382 = vmul.f32 %v378, 0.03125
    %v383 = vmax.f32 %v327, %v329
    %v384 = vmax.f32 %v383, %v331
    %v385 = vmax.f32 %v384, %v333
    %v386 = vrot.slane %v385, 4
    %v387 = vmax.f32 %v385, %v386
    %v388 = vrot.slane %v387, 2
    %v389 = vmax.f32 %v387, %v388
    %v390 = vrot.slane %v389, 1
    %v391 = vmax.f32 %v389, %v390
    %v392 = vmax.f32 %v328, %v330
    %v393 = vmax.f32 %v392, %v332
    %v394 = vmax.f32 %v393, %v334
    %v395 = vrot.slane %v394, 4
    %v396 = vmax.f32 %v394, %v395
    %v397 = vrot.slane %v396, 2
    %v398 = vmax.f32 %v396, %v397
    %v399 = vrot.slane %v398, 1
    %v400 = vmax.f32 %v398, %v399
    %v401 = vmax.f32 %v335, %v337
    %v402 = vmax.f32 %v401, %v339
    %v403 = vmax.f32 %v402, %v341
    %v404 = vrot.slane %v403, 4
    %v405 = vmax.f32 %v403, %v404
    %v406 = vrot.slane %v405, 2
    %v407 = vmax.f32 %v405, %v406
    %v408 = vrot.slane %v407, 1
    %v409 = vmax.f32 %v407, %v408
    %v410 = vmax.f32 %v336, %v338
    %v411 = vmax.f32 %v410, %v340
    %v412 = vmax.f32 %v411, %v342
    %v413 = vrot.slane %v412, 4
    %v414 = vmax.f32 %v412, %v413
    %v415 = vrot.slane %v414, 2
    %v416 = vmax.f32 %v414, %v415
    %v417 = vrot.slane %v416, 1
    %v418 = vmax.f32 %v416, %v417
    %v423 = vsel %vm156, %v381, %v379
    %v424 = vsel %vm156, %v382, %v380
    %v431 = vsel %vm156, %v409, %v391
    %v432 = vsel %vm156, %v418, %v400
    %v435 = vpack.c.bf16 %v423, %v423
    %v436 = vpack.c.bf16 %v424, %v424
    %v437 = vpack.c.bf16 %v431, %v431
    %v438 = vpack.c.bf16 %v432, %v432
    %v439 = vld [vmem:[#allocation5] sm:$0xff]
    %v440 = vld [vmem:[#allocation5 + $0x8] sm:$0xff]
    %v441 = vld [vmem:[#allocation5 + $0x10] sm:$0xff]
    %v442 = vld [vmem:[#allocation5 + $0x18] sm:$0xff]
    %v443 = vld [vmem:[#allocation5 + $0x20] sm:$0xff]
    %v444 = vld [vmem:[#allocation5 + $0x28] sm:$0xff]
    %v445 = vld [vmem:[#allocation5 + $0x30] sm:$0xff]
    %v446 = vld [vmem:[#allocation5 + $0x38] sm:$0xff]
    %v447 = vld [vmem:[#allocation5 + $0x40] sm:$0xff]
    %v448 = vld [vmem:[#allocation5 + $0x48] sm:$0xff]
    %v449 = vld [vmem:[#allocation5 + $0x50] sm:$0xff]
    %v450 = vld [vmem:[#allocation5 + $0x58] sm:$0xff]
    %v451 = vld [vmem:[#allocation5 + $0x60] sm:$0xff]
    %v452 = vld [vmem:[#allocation5 + $0x68] sm:$0xff]
    %v453 = vld [vmem:[#allocation5 + $0x70] sm:$0xff]
    %v454 = vld [vmem:[#allocation5 + $0x78] sm:$0xff]
    %v455 = vld [vmem:[#allocation5 + $0x80] sm:$0xff]
    %v456 = vld [vmem:[#allocation5 + $0x88] sm:$0xff]
    %v457 = vld [vmem:[#allocation5 + $0x90] sm:$0xff]
    %v458 = vld [vmem:[#allocation5 + $0x98] sm:$0xff]
    %v459 = vld [vmem:[#allocation5 + $0xa0] sm:$0xff]
    %v460 = vld [vmem:[#allocation5 + $0xa8] sm:$0xff]
    %v461 = vld [vmem:[#allocation5 + $0xb0] sm:$0xff]
    %v462 = vld [vmem:[#allocation5 + $0xb8] sm:$0xff]
    %v463 = vld [vmem:[#allocation5 + $0xc0] sm:$0xff]
    %v464 = vld [vmem:[#allocation5 + $0xc8] sm:$0xff]
    %v465 = vld [vmem:[#allocation5 + $0xd0] sm:$0xff]
    %v466 = vld [vmem:[#allocation5 + $0xd8] sm:$0xff]
    %v467 = vld [vmem:[#allocation5 + $0xe0] sm:$0xff]
    %v468 = vld [vmem:[#allocation5 + $0xe8] sm:$0xff]
    %v469 = vld [vmem:[#allocation5 + $0xf0] sm:$0xff]
    %v470 = vld [vmem:[#allocation5 + $0xf8] sm:$0xff]
    %v471 = vld [vmem:[#allocation5 + $0x100] sm:$0xff]
    %v472 = vld [vmem:[#allocation5 + $0x108] sm:$0xff]
    %v473 = vld [vmem:[#allocation5 + $0x110] sm:$0xff]
    %v474 = vld [vmem:[#allocation5 + $0x118] sm:$0xff]
    %v475 = vld [vmem:[#allocation5 + $0x120] sm:$0xff]
    %v476 = vld [vmem:[#allocation5 + $0x128] sm:$0xff]
    %v477 = vld [vmem:[#allocation5 + $0x130] sm:$0xff]
    %v478 = vld [vmem:[#allocation5 + $0x138] sm:$0xff]
    %v479 = vld [vmem:[#allocation5 + $0x140] sm:$0xff]
    %v480 = vld [vmem:[#allocation5 + $0x148] sm:$0xff]
    %v481 = vld [vmem:[#allocation5 + $0x150] sm:$0xff]
    %v482 = vld [vmem:[#allocation5 + $0x158] sm:$0xff]
    %v483 = vld [vmem:[#allocation5 + $0x160] sm:$0xff]
    %v484 = vld [vmem:[#allocation5 + $0x168] sm:$0xff]
    %v485 = vld [vmem:[#allocation5 + $0x170] sm:$0xff]
    %v486 = vld [vmem:[#allocation5 + $0x178] sm:$0xff]
    %v487 = vld [vmem:[#allocation5 + $0x180] sm:$0xff]
    %v488 = vld [vmem:[#allocation5 + $0x188] sm:$0xff]
    %v489 = vld [vmem:[#allocation5 + $0x190] sm:$0xff]
    %v490 = vld [vmem:[#allocation5 + $0x198] sm:$0xff]
    %v491 = vld [vmem:[#allocation5 + $0x1a0] sm:$0xff]
    %v492 = vld [vmem:[#allocation5 + $0x1a8] sm:$0xff]
    %v493 = vld [vmem:[#allocation5 + $0x1b0] sm:$0xff]
    %v494 = vld [vmem:[#allocation5 + $0x1b8] sm:$0xff]
    %v495 = vld [vmem:[#allocation5 + $0x1c0] sm:$0xff]
    %v496 = vld [vmem:[#allocation5 + $0x1c8] sm:$0xff]
    %v497 = vld [vmem:[#allocation5 + $0x1d0] sm:$0xff]
    %v498 = vld [vmem:[#allocation5 + $0x1d8] sm:$0xff]
    %v499 = vld [vmem:[#allocation5 + $0x1e0] sm:$0xff]
    %v500 = vld [vmem:[#allocation5 + $0x1e8] sm:$0xff]
    %v501 = vld [vmem:[#allocation5 + $0x1f0] sm:$0xff]
    %v502 = vld [vmem:[#allocation5 + $0x1f8] sm:$0xff]
    %v567 = vunpack.c.l.b16 %v439
    %v568 = vunpack.c.h.b16 %v439
    %v569 = vunpack.c.l.b16 %v440
    %v570 = vunpack.c.h.b16 %v440
    %v571 = vunpack.c.l.b16 %v441
    %v572 = vunpack.c.h.b16 %v441
    %v573 = vunpack.c.l.b16 %v442
    %v574 = vunpack.c.h.b16 %v442
    %v575 = vunpack.c.l.b16 %v443
    %v576 = vunpack.c.h.b16 %v443
    %v577 = vunpack.c.l.b16 %v444
    %v578 = vunpack.c.h.b16 %v444
    %v579 = vunpack.c.l.b16 %v445
    %v580 = vunpack.c.h.b16 %v445
    %v581 = vunpack.c.l.b16 %v446
    %v582 = vunpack.c.h.b16 %v446
    %v583 = vunpack.c.l.b16 %v447
    %v584 = vunpack.c.h.b16 %v447
    %v585 = vunpack.c.l.b16 %v448
    %v586 = vunpack.c.h.b16 %v448
    %v587 = vunpack.c.l.b16 %v449
    %v588 = vunpack.c.h.b16 %v449
    %v589 = vunpack.c.l.b16 %v450
    %v590 = vunpack.c.h.b16 %v450
    %v591 = vunpack.c.l.b16 %v451
    %v592 = vunpack.c.h.b16 %v451
    %v593 = vunpack.c.l.b16 %v452
    %v594 = vunpack.c.h.b16 %v452
    %v595 = vunpack.c.l.b16 %v453
    %v596 = vunpack.c.h.b16 %v453
    %v597 = vunpack.c.l.b16 %v454
    %v598 = vunpack.c.h.b16 %v454
    %v599 = vunpack.c.l.b16 %v455
    %v600 = vunpack.c.h.b16 %v455
    %v601 = vunpack.c.l.b16 %v456
    %v602 = vunpack.c.h.b16 %v456
    %v603 = vunpack.c.l.b16 %v457
    %v604 = vunpack.c.h.b16 %v457
    %v605 = vunpack.c.l.b16 %v458
    %v606 = vunpack.c.h.b16 %v458
    %v607 = vunpack.c.l.b16 %v459
    %v608 = vunpack.c.h.b16 %v459
    %v609 = vunpack.c.l.b16 %v460
    %v610 = vunpack.c.h.b16 %v460
    %v611 = vunpack.c.l.b16 %v461
    %v612 = vunpack.c.h.b16 %v461
    %v613 = vunpack.c.l.b16 %v462
    %v614 = vunpack.c.h.b16 %v462
    %v615 = vunpack.c.l.b16 %v463
    %v616 = vunpack.c.h.b16 %v463
    %v617 = vunpack.c.l.b16 %v464
    %v618 = vunpack.c.h.b16 %v464
    %v619 = vunpack.c.l.b16 %v465
    %v620 = vunpack.c.h.b16 %v465
    %v621 = vunpack.c.l.b16 %v466
    %v622 = vunpack.c.h.b16 %v466
    %v623 = vunpack.c.l.b16 %v467
    %v624 = vunpack.c.h.b16 %v467
    %v625 = vunpack.c.l.b16 %v468
    %v626 = vunpack.c.h.b16 %v468
    %v627 = vunpack.c.l.b16 %v469
    %v628 = vunpack.c.h.b16 %v469
    %v629 = vunpack.c.l.b16 %v470
    %v630 = vunpack.c.h.b16 %v470
    %v631 = vunpack.c.l.b16 %v471
    %v632 = vunpack.c.h.b16 %v471
    %v633 = vunpack.c.l.b16 %v472
    %v634 = vunpack.c.h.b16 %v472
    %v635 = vunpack.c.l.b16 %v473
    %v636 = vunpack.c.h.b16 %v473
    %v637 = vunpack.c.l.b16 %v474
    %v638 = vunpack.c.h.b16 %v474
    %v639 = vunpack.c.l.b16 %v475
    %v640 = vunpack.c.h.b16 %v475
    %v641 = vunpack.c.l.b16 %v476
    %v642 = vunpack.c.h.b16 %v476
    %v643 = vunpack.c.l.b16 %v477
    %v644 = vunpack.c.h.b16 %v477
    %v645 = vunpack.c.l.b16 %v478
    %v646 = vunpack.c.h.b16 %v478
    %v647 = vunpack.c.l.b16 %v479
    %v648 = vunpack.c.h.b16 %v479
    %v649 = vunpack.c.l.b16 %v480
    %v650 = vunpack.c.h.b16 %v480
    %v651 = vunpack.c.l.b16 %v481
    %v652 = vunpack.c.h.b16 %v481
    %v653 = vunpack.c.l.b16 %v482
    %v654 = vunpack.c.h.b16 %v482
    %v655 = vunpack.c.l.b16 %v483
    %v656 = vunpack.c.h.b16 %v483
    %v657 = vunpack.c.l.b16 %v484
    %v658 = vunpack.c.h.b16 %v484
    %v659 = vunpack.c.l.b16 %v485
    %v660 = vunpack.c.h.b16 %v485
    %v661 = vunpack.c.l.b16 %v486
    %v662 = vunpack.c.h.b16 %v486
    %v663 = vunpack.c.l.b16 %v487
    %v664 = vunpack.c.h.b16 %v487
    %v665 = vunpack.c.l.b16 %v488
    %v666 = vunpack.c.h.b16 %v488
    %v667 = vunpack.c.l.b16 %v489
    %v668 = vunpack.c.h.b16 %v489
    %v669 = vunpack.c.l.b16 %v490
    %v670 = vunpack.c.h.b16 %v490
    %v671 = vunpack.c.l.b16 %v491
    %v672 = vunpack.c.h.b16 %v491
    %v673 = vunpack.c.l.b16 %v492
    %v674 = vunpack.c.h.b16 %v492
    %v675 = vunpack.c.l.b16 %v493
    %v676 = vunpack.c.h.b16 %v493
    %v677 = vunpack.c.l.b16 %v494
    %v678 = vunpack.c.h.b16 %v494
    %v679 = vunpack.c.l.b16 %v495
    %v680 = vunpack.c.h.b16 %v495
    %v681 = vunpack.c.l.b16 %v496
    %v682 = vunpack.c.h.b16 %v496
    %v683 = vunpack.c.l.b16 %v497
    %v684 = vunpack.c.h.b16 %v497
    %v685 = vunpack.c.l.b16 %v498
    %v686 = vunpack.c.h.b16 %v498
    %v687 = vunpack.c.l.b16 %v499
    %v688 = vunpack.c.h.b16 %v499
    %v689 = vunpack.c.l.b16 %v500
    %v690 = vunpack.c.h.b16 %v500
    %v691 = vunpack.c.l.b16 %v501
    %v692 = vunpack.c.h.b16 %v501
    %v693 = vunpack.c.l.b16 %v502
    %v694 = vunpack.c.h.b16 %v502
    %v695 = vpack.c.b16 %v569, %v567
    %v696 = vpack.c.b16 %v570, %v568
    %v697 = vpack.c.b16 %v573, %v571
    %v698 = vpack.c.b16 %v574, %v572
    %v699 = vpack.c.b16 %v577, %v575
    %v700 = vpack.c.b16 %v578, %v576
    %v701 = vpack.c.b16 %v581, %v579
    %v702 = vpack.c.b16 %v582, %v580
    %v703 = vpack.c.b16 %v585, %v583
    %v704 = vpack.c.b16 %v586, %v584
    %v705 = vpack.c.b16 %v589, %v587
    %v706 = vpack.c.b16 %v590, %v588
    %v707 = vpack.c.b16 %v593, %v591
    %v708 = vpack.c.b16 %v594, %v592
    %v709 = vpack.c.b16 %v597, %v595
    %v710 = vpack.c.b16 %v598, %v596
    %v711 = vpack.c.b16 %v601, %v599
    %v712 = vpack.c.b16 %v602, %v600
    %v713 = vpack.c.b16 %v605, %v603
    %v714 = vpack.c.b16 %v606, %v604
    %v715 = vpack.c.b16 %v609, %v607
    %v716 = vpack.c.b16 %v610, %v608
    %v717 = vpack.c.b16 %v613, %v611
    %v718 = vpack.c.b16 %v614, %v612
    %v719 = vpack.c.b16 %v617, %v615
    %v720 = vpack.c.b16 %v618, %v616
    %v721 = vpack.c.b16 %v621, %v619
    %v722 = vpack.c.b16 %v622, %v620
    %v723 = vpack.c.b16 %v625, %v623
    %v724 = vpack.c.b16 %v626, %v624
    %v725 = vpack.c.b16 %v629, %v627
    %v726 = vpack.c.b16 %v630, %v628
    %v727 = vpack.c.b16 %v633, %v631
    %v728 = vpack.c.b16 %v634, %v632
    %v729 = vpack.c.b16 %v637, %v635
    %v730 = vpack.c.b16 %v638, %v636
    %v731 = vpack.c.b16 %v641, %v639
    %v732 = vpack.c.b16 %v642, %v640
    %v733 = vpack.c.b16 %v645, %v643
    %v734 = vpack.c.b16 %v646, %v644
    %v735 = vpack.c.b16 %v649, %v647
    %v736 = vpack.c.b16 %v650, %v648
    %v737 = vpack.c.b16 %v653, %v651
    %v738 = vpack.c.b16 %v654, %v652
    %v739 = vpack.c.b16 %v657, %v655
    %v740 = vpack.c.b16 %v658, %v656
    %v741 = vpack.c.b16 %v661, %v659
    %v742 = vpack.c.b16 %v662, %v660
    %v743 = vpack.c.b16 %v665, %v663
    %v744 = vpack.c.b16 %v666, %v664
    %v745 = vpack.c.b16 %v669, %v667
    %v746 = vpack.c.b16 %v670, %v668
    %v747 = vpack.c.b16 %v673, %v671
    %v748 = vpack.c.b16 %v674, %v672
    %v749 = vpack.c.b16 %v677, %v675
    %v750 = vpack.c.b16 %v678, %v676
    %v751 = vpack.c.b16 %v681, %v679
    %v752 = vpack.c.b16 %v682, %v680
    %v753 = vpack.c.b16 %v685, %v683
    %v754 = vpack.c.b16 %v686, %v684
    %v755 = vpack.c.b16 %v689, %v687
    %v756 = vpack.c.b16 %v690, %v688
    %v757 = vpack.c.b16 %v693, %v691
    %v758 = vpack.c.b16 %v694, %v692
    %823 = vmatpush.bf16.msra.mxu0 %v709
    %824 = vmatpush.bf16.msra.mxu0 %v707
    %825 = vmatpush.bf16.msra.mxu0 %v705
    %826 = vmatpush.bf16.msra.mxu0 %v703
    %827 = vmatpush.bf16.msra.mxu0 %v701
    %828 = vmatpush.bf16.msra.mxu0 %v699
    %829 = vmatpush.bf16.msra.mxu0 %v697
    %830 = vmatpush.bf16.msra.mxu0 %v695
    %831 = vmatmul.bf16.gmra.mxu0 %v435
    %v832 = vpop.f32.mrf.mxu0
    %v833 = vadd.f32 0.0, %v832
    %v834 = vpop.f32.mrf.mxu0
    %835 = vdwg.mxu0
    %836 = vmatpush.bf16.msra.mxu0 %v725
    %837 = vmatpush.bf16.msra.mxu0 %v723
    %838 = vmatpush.bf16.msra.mxu0 %v721
    %839 = vmatpush.bf16.msra.mxu0 %v719
    %840 = vmatpush.bf16.msra.mxu0 %v717
    %841 = vmatpush.bf16.msra.mxu0 %v715
    %842 = vmatpush.bf16.msra.mxu0 %v713
    %843 = vmatpush.bf16.msra.mxu0 %v711
    %844 = vmatmul.bf16.gmra.mxu0 %v436
    %v845 = vpop.f32.mrf.mxu0
    %v846 = vadd.f32 %v833, %v845
    %v847 = vpop.f32.mrf.mxu0
    %848 = vdwg.mxu0
    %849 = vmatpush.bf16.msra.mxu0 %v741
    %850 = vmatpush.bf16.msra.mxu0 %v739
    %851 = vmatpush.bf16.msra.mxu0 %v737
    %852 = vmatpush.bf16.msra.mxu0 %v735
    %853 = vmatpush.bf16.msra.mxu0 %v733
    %854 = vmatpush.bf16.msra.mxu0 %v731
    %855 = vmatpush.bf16.msra.mxu0 %v729
    %856 = vmatpush.bf16.msra.mxu0 %v727
    %857 = vmatmul.bf16.gmra.mxu0 %v437
    %v858 = vpop.f32.mrf.mxu0
    %v859 = vadd.f32 %v846, %v858
    %v860 = vpop.f32.mrf.mxu0
    %861 = vdwg.mxu0
    %862 = vmatpush.bf16.msra.mxu0 %v757
    %863 = vmatpush.bf16.msra.mxu0 %v755
    %864 = vmatpush.bf16.msra.mxu0 %v753
    %865 = vmatpush.bf16.msra.mxu0 %v751
    %866 = vmatpush.bf16.msra.mxu0 %v749
    %867 = vmatpush.bf16.msra.mxu0 %v747
    %868 = vmatpush.bf16.msra.mxu0 %v745
    %869 = vmatpush.bf16.msra.mxu0 %v743
    %870 = vmatmul.bf16.gmra.mxu0 %v438
    %v871 = vpop.f32.mrf.mxu0
    %v872 = vadd.f32 %v859, %v871
    %v873 = vpop.f32.mrf.mxu0
    %874 = vdwg.mxu0
    %875 = vmatpush.bf16.msra.mxu0 %v710
    %876 = vmatpush.bf16.msra.mxu0 %v708
    %877 = vmatpush.bf16.msra.mxu0 %v706
    %878 = vmatpush.bf16.msra.mxu0 %v704
    %879 = vmatpush.bf16.msra.mxu0 %v702
    %880 = vmatpush.bf16.msra.mxu0 %v700
    %881 = vmatpush.bf16.msra.mxu0 %v698
    %882 = vmatpush.bf16.msra.mxu0 %v696
    %883 = vmatmul.bf16.gmra.mxu0 %v435
    %v884 = vpop.f32.mrf.mxu0
    %v885 = vadd.f32 0.0, %v884
    %v886 = vpop.f32.mrf.mxu0
    %887 = vdwg.mxu0
    %888 = vmatpush.bf16.msra.mxu0 %v726
    %889 = vmatpush.bf16.msra.mxu0 %v724
    %890 = vmatpush.bf16.msra.mxu0 %v722
    %891 = vmatpush.bf16.msra.mxu0 %v720
    %892 = vmatpush.bf16.msra.mxu0 %v718
    %893 = vmatpush.bf16.msra.mxu0 %v716
    %894 = vmatpush.bf16.msra.mxu0 %v714
    %895 = vmatpush.bf16.msra.mxu0 %v712
    %896 = vmatmul.bf16.gmra.mxu0 %v436
    %v897 = vpop.f32.mrf.mxu0
    %v898 = vadd.f32 %v885, %v897
    %v899 = vpop.f32.mrf.mxu0
    %900 = vdwg.mxu0
    %901 = vmatpush.bf16.msra.mxu0 %v742
    %902 = vmatpush.bf16.msra.mxu0 %v740
    %903 = vmatpush.bf16.msra.mxu0 %v738
    %904 = vmatpush.bf16.msra.mxu0 %v736
    %905 = vmatpush.bf16.msra.mxu0 %v734
    %906 = vmatpush.bf16.msra.mxu0 %v732
    %907 = vmatpush.bf16.msra.mxu0 %v730
    %908 = vmatpush.bf16.msra.mxu0 %v728
    %909 = vmatmul.bf16.gmra.mxu0 %v437
    %v910 = vpop.f32.mrf.mxu0
    %v911 = vadd.f32 %v898, %v910
    %v912 = vpop.f32.mrf.mxu0
    %913 = vdwg.mxu0
    %914 = vmatpush.bf16.msra.mxu0 %v758
    %915 = vmatpush.bf16.msra.mxu0 %v756
    %916 = vmatpush.bf16.msra.mxu0 %v754
    %917 = vmatpush.bf16.msra.mxu0 %v752
    %918 = vmatpush.bf16.msra.mxu0 %v750
    %919 = vmatpush.bf16.msra.mxu0 %v748
    %920 = vmatpush.bf16.msra.mxu0 %v746
    %921 = vmatpush.bf16.msra.mxu0 %v744
    %922 = vmatmul.bf16.gmra.mxu0 %v438
    %v923 = vpop.f32.mrf.mxu0
    %v924 = vadd.f32 %v911, %v923
    %v925 = vpop.f32.mrf.mxu0
    %926 = vdwg.mxu0
    %v927 = vxor.u32 %v872, 2147483648
    %v928 = vxor.u32 %v924, 2147483648
    %v929 = vmul.f32 %v927, 1.442695
    %v930 = vpow.pop %v929
    %v931 = vmul.f32 %v928, 1.442695
    %v932 = vpow.pop %v931
    %v933 = vadd.f32 %v930, 1.0
    %v934 = vadd.f32 %v932, 1.0
    %v935 = vrcp.pop %v933
    %v936 = vmul.f32 %v933, %v935
    %v937 = vsub.f32 1.0, %v936
    %v938 = vmul.f32 %v935, %v937
    %v939 = vadd.f32 %v935, %v938
    %vm940 = vweird.f32 %v933
    %vm941 = vweird.f32 %v935
    %vm942 = vmor %vm940, %vm941
    %v943 = vsel %vm942, %v935, %v939
    %v944 = vand.u32 2147483647, %v933
    %vm945 = vcmp.eq.f32.partialorder %v944, 8.507059e+37
    %v946 = vand.u32 %v933, 2147483648
    %v947 = vor.u32 1.1754944e-38, %v946
    %v948 = vsel %vm945, %v947, %v943
    %v949 = vmul.f32 1.0, %v948
    %v950 = vrcp.pop %v934
    %v951 = vmul.f32 %v934, %v950
    %v952 = vsub.f32 1.0, %v951
    %v953 = vmul.f32 %v950, %v952
    %v954 = vadd.f32 %v950, %v953
    %vm955 = vweird.f32 %v934
    %vm956 = vweird.f32 %v950
    %vm957 = vmor %vm955, %vm956
    %v958 = vsel %vm957, %v950, %v954
    %v959 = vand.u32 2147483647, %v934
    %vm960 = vcmp.eq.f32.partialorder %v959, 8.507059e+37
    %v961 = vand.u32 %v934, 2147483648
    %v962 = vor.u32 1.1754944e-38, %v961
    %v963 = vsel %vm960, %v962, %v958
    %v964 = vmul.f32 1.0, %v963
    %v967 = vrot.slane %v964, 7
    %vm968 = vcmask 1040384
    %v969 = vsel %vm968, %v949, %v967
    %v970 = vsel %vm156, %v949, %v967
    %v971 = vrot.slane %v970, 1
    %v972 = vperm.slane %v969, 0
    %v973 = vperm.slane %v969, 1
    %v974 = vperm.slane %v971, 0
    %v975 = vperm.slane %v971, 1
    %v980 = vmul.f32 %v327, %v972
    %v981 = vmul.f32 %v328, %v973
    %v982 = vmul.f32 %v329, %v972
    %v983 = vmul.f32 %v330, %v973
    %v984 = vmul.f32 %v331, %v972
    %v985 = vmul.f32 %v332, %v973
    %v986 = vmul.f32 %v333, %v972
    %v987 = vmul.f32 %v334, %v973
    %v988 = vmul.f32 %v335, %v974
    %v989 = vmul.f32 %v336, %v975
    %v990 = vmul.f32 %v337, %v974
    %v991 = vmul.f32 %v338, %v975
    %v992 = vmul.f32 %v339, %v974
    %v993 = vmul.f32 %v340, %v975
    %v994 = vmul.f32 %v341, %v974
    %v995 = vmul.f32 %v342, %v975
    %996 = vst [vmem:[#allocation7] sm:$0xff] %v980
    %997 = vst [vmem:[#allocation7 + $0x8] sm:$0xff] %v981
    %998 = vst [vmem:[#allocation7 + $0x10] sm:$0xff] %v982
    %999 = vst [vmem:[#allocation7 + $0x18] sm:$0xff] %v983
    %1000 = vst [vmem:[#allocation7 + $0x20] sm:$0xff] %v984
    %1001 = vst [vmem:[#allocation7 + $0x28] sm:$0xff] %v985
    %1002 = vst [vmem:[#allocation7 + $0x30] sm:$0xff] %v986
    %1003 = vst [vmem:[#allocation7 + $0x38] sm:$0xff] %v987
    %1004 = vst [vmem:[#allocation7 + $0x40] sm:$0xff] %v988
    %1005 = vst [vmem:[#allocation7 + $0x48] sm:$0xff] %v989
    %1006 = vst [vmem:[#allocation7 + $0x50] sm:$0xff] %v990
    %1007 = vst [vmem:[#allocation7 + $0x58] sm:$0xff] %v991
    %1008 = vst [vmem:[#allocation7 + $0x60] sm:$0xff] %v992
    %1009 = vst [vmem:[#allocation7 + $0x68] sm:$0xff] %v993
    %1010 = vst [vmem:[#allocation7 + $0x70] sm:$0xff] %v994
    %1011 = vst [vmem:[#allocation7 + $0x78] sm:$0xff] %v995
    // Predicated region
    $region26: #{tpu_custom_call.1} parent=1 // pred_check
      _
    $region27: #{tpu_custom_call.1} parent=1 // pred_check_branch
      %1013 = sbr.rel (0) target = $region29
    $region28: #{tpu_custom_call.1} parent=1 // pred_region
      %1015 = vsyncadd [#allocation4], 0
      %s1016 = sshll.u32 [#allocation7], 4
      %s1017 = int_to_ptr.vmem [resolvable:$true] %s1016
      %s1018 = sshll.u32 %s4, 4
      %s1019 = int_to_ptr.hbm [resolvable:$true] %s1018
      %1024 = dma.vmem_to_hbm [thread:$0]  %s1017, 2048, %s1019, [#allocation4], 256, 256, 16
    $region29: #{tpu_custom_call.1} parent=1 // pred_fallthru
      _
    // Predicated region
    $region30: #{tpu_custom_call.1} parent=1 // pred_check
      _
    $region31: #{tpu_custom_call.1} parent=1 // pred_check_branch
      %1026 = sbr.rel (0) target = $region33
    $region32: #{tpu_custom_call.1} parent=1 // pred_region
      %1028 = dma.done [#allocation4], 2048
    $region33: #{tpu_custom_call.1} parent=1 // pred_fallthru
      _
    %1029 = vsyncpa [#allocation3], 1
    %1030 = vsyncpa [#allocation6], 1
    %1031 = vsyncpa [#allocation4], 1

</llo_original>
